<compile_context>
chip_gen: v5e
topology: v5e:2x2
jax: 0.10.0
libtpu: 0.0.40
codegen_flags: <defaults>
</compile_context>

<pallas_src>
import functools

import jax
import jax.numpy as jnp
import numpy as np
from jax.experimental import pallas as pl
from jax.experimental.pallas import tpu as pltpu


# ---------------------------------------------------------------------------
# Kernels
# ---------------------------------------------------------------------------

def _scse_fused_kernel(x_ref, w1_ref, b1_ref, w2_ref, b2_ref, ws_ref, bs_ref,
                       o_ref, *, inv_hw):
    # x_ref : (C, HW)   whole spatial extent for one batch element (resident)
    # w1_ref: (Cr, C)   cSE conv1 weight (PyTorch layout), b1_ref: (Cr, 1)
    # w2_ref: (C, Cr)   cSE conv2 weight,                  b2_ref: (C, 1)
    # ws_ref: (1, C)    sSE 1x1-conv weight row,            bs_ref: (1, 1) SMEM scalar
    x = x_ref[...].astype(jnp.float32)                                   # (C, HW)

    # --- cSE: global average pool + 2-layer MLP + sigmoid, all in-kernel ----
    pooled = jnp.sum(x, axis=1, keepdims=True) * inv_hw                  # (C, 1)
    hmid = jnp.maximum(
        jnp.dot(w1_ref[...], pooled, preferred_element_type=jnp.float32)
        + b1_ref[...], 0.0)                                              # (Cr, 1)
    c_gate = jax.nn.sigmoid(
        jnp.dot(w2_ref[...], hmid, preferred_element_type=jnp.float32)
        + b2_ref[...])                                                   # (C, 1)

    # --- sSE: per-pixel channel reduction on the (otherwise idle) MXU -------
    s_gate = jax.nn.sigmoid(
        jnp.dot(ws_ref[...], x, preferred_element_type=jnp.float32)
        + bs_ref[0, 0])                                                  # (1, HW)

    # x*cSE + x*sSE == x*(cSE + sSE): one mul/element, lane-dense store.
    o_ref[...] = (x * (c_gate + s_gate)).astype(o_ref.dtype)


def _scse_tiled_kernel(x_ref, ws_ref, bs_ref, cg_ref, o_ref):
    # x_ref : (C, T) spatial tile; cg_ref: (C, 1) precomputed cSE gate (this batch)
    x = x_ref[...].astype(jnp.float32)                                   # (C, T)
    s_gate = jax.nn.sigmoid(
        jnp.dot(ws_ref[...], x, preferred_element_type=jnp.float32)
        + bs_ref[0, 0])                                                  # (1, T)
    o_ref[...] = (x * (cg_ref[...] + s_gate)).astype(o_ref.dtype)


# ---------------------------------------------------------------------------
# Tiling / VMEM heuristics
# ---------------------------------------------------------------------------

# Per-(C,HW)-block byte limit for the fused-residency path.  4 double-buffered
# blocks + f32 intermediates stay well under v7x's 64 MiB physical VMEM.
_FUSED_BLOCK_BYTES_LIMIT = 6 << 20


def _choose_tile_hw(hw, c, itemsize, target_bytes=2 << 20, cap_bytes=11 << 20,
                    min_lanes=512):
    """Spatial (lane) tile: ~2 MiB per (C, T) f32-ish block, >=512 lanes, mult of 128."""
    row_bytes = max(1, c * itemsize)
    t = (target_bytes // row_bytes) // 128 * 128
    t = max(t, min_lanes)
    t_cap = max(128, (cap_bytes // row_bytes) // 128 * 128)  # keep 4 buffers < ~44 MiB
    t = min(t, t_cap)
    if t >= hw:
        return hw  # single full-width block (legal even when hw % 128 != 0)
    return t       # multiple of 128; non-divisible HW -> one masked tail tile


def _vmem_limit_bytes(block_bytes, c, t):
    f32_block = c * t * 4
    limit = 4 * block_bytes + 3 * f32_block + (6 << 20)   # buffers + intermediates
    return int(min(max(limit, 16 << 20), 56 << 20))       # v5e default .. v7x ceiling


# ---------------------------------------------------------------------------
# Wrapper
# ---------------------------------------------------------------------------

def scse_attention(x_nchw, w1, b1, w2, b2, ws, bs, *, fuse=None, tile_hw=None):
    """SCSE forward on NCHW input.

    Weight layout (PyTorch 1x1-conv layout, flattened):
      w1: (Cr, C)  b1: (Cr, 1)   first cSE conv
      w2: (C, Cr)  b2: (C, 1)    second cSE conv
      ws: (1, C)   bs: (1, 1)    sSE conv
    """
    B, C, H, W = x_nchw.shape
    HW = H * W
    x = x_nchw.reshape(B, C, HW)                    # free view, no transpose
    itemsize = jnp.dtype(x.dtype).itemsize

    f32 = jnp.float32
    w1 = w1.reshape(-1, C).astype(f32)
    b1 = b1.reshape(-1, 1).astype(f32)
    w2 = w2.reshape(C, -1).astype(f32)
    b2 = b2.reshape(C, 1).astype(f32)
    ws_row = ws.reshape(1, C).astype(f32)
    bs = bs.reshape(1, 1).astype(f32)
    Cr = w1.shape[0]

    if fuse is None:
        fuse = (C * HW * itemsize) <= _FUSED_BLOCK_BYTES_LIMIT

    if fuse:
        # ---- single-pass residency path: grid=(B,), pool fused into kernel ----
        block_bytes = C * HW * itemsize
        kern = functools.partial(_scse_fused_kernel, inv_hw=float(1.0 / HW))
        out = pl.pallas_call(
            kern,
            out_shape=jax.ShapeDtypeStruct((B, C, HW), x.dtype),
            grid_spec=pltpu.PrefetchScalarGridSpec(
                num_scalar_prefetch=0,
                grid=(B,),
                in_specs=[
                    pl.BlockSpec((pl.Squeezed(), C, HW), lambda b: (b, 0, 0)),  # x
                    pl.BlockSpec((Cr, C), lambda b: (0, 0)),                    # w1
                    pl.BlockSpec((Cr, 1), lambda b: (0, 0)),                    # b1
                    pl.BlockSpec((C, Cr), lambda b: (0, 0)),                    # w2
                    pl.BlockSpec((C, 1), lambda b: (0, 0)),                     # b2
                    pl.BlockSpec((1, C), lambda b: (0, 0)),                     # ws
                    pl.BlockSpec(memory_space=pltpu.MemorySpace.SMEM),          # bs
                ],
                out_specs=pl.BlockSpec((pl.Squeezed(), C, HW), lambda b: (b, 0, 0)),
            ),
            compiler_params=pltpu.CompilerParams(
                dimension_semantics=("parallel",),
                vmem_limit_bytes=_vmem_limit_bytes(block_bytes, C, HW)),
        )(x, w1, b1, w2, b2, ws_row, bs)
        return out.reshape(B, C, H, W)

    # ---- two-pass fallback: cSE gate hoisted to plain JAX, tiled combine ------
    pooled = jnp.mean(x.astype(f32), axis=2)                         # (B, C) f32 accum
    hmid = jnp.maximum(pooled @ w1.T + b1[:, 0], 0.0)                # (B, Cr)
    c_gate = jax.nn.sigmoid(hmid @ w2.T + b2[:, 0])[:, :, None]      # (B, C, 1) f32

    T = int(tile_hw) if tile_hw is not None else _choose_tile_hw(HW, C, itemsize)
    block_bytes = C * T * itemsize
    grid = (B, pl.cdiv(HW, T))

    out = pl.pallas_call(
        _scse_tiled_kernel,
        out_shape=jax.ShapeDtypeStruct((B, C, HW), x.dtype),
        grid_spec=pltpu.PrefetchScalarGridSpec(
            num_scalar_prefetch=0,
            grid=grid,
            in_specs=[
                pl.BlockSpec((pl.Squeezed(), C, T), lambda b, t: (b, 0, t)),   # x tile
                pl.BlockSpec((1, C), lambda b, t: (0, 0)),                     # ws
                pl.BlockSpec(memory_space=pltpu.MemorySpace.SMEM),             # bs
                pl.BlockSpec((pl.Squeezed(), C, 1), lambda b, t: (b, 0, 0)),   # c_gate
            ],
            out_specs=pl.BlockSpec((pl.Squeezed(), C, T), lambda b, t: (b, 0, t)),
        ),
        compiler_params=pltpu.CompilerParams(
            dimension_semantics=("parallel", "parallel"),
            vmem_limit_bytes=_vmem_limit_bytes(block_bytes, C, T)),
    )(x, ws_row, bs, c_gate)
    return out.reshape(B, C, H, W)


# ---------------------------------------------------------------------------
# Pure-JAX reference (mirrors PyTorch SCSEModule semantics, NCHW)
# ---------------------------------------------------------------------------

def _reference_scse(x_nchw, w1, b1, w2, b2, ws, bs):
    pooled = jnp.mean(x_nchw, axis=(2, 3))                            # (B, C)
    hmid = jnp.maximum(pooled @ w1.T + b1[:, 0], 0.0)                 # (B, Cr)
    c_gate = jax.nn.sigmoid(hmid @ w2.T + b2[:, 0])                   # (B, C)
    s_logit = jnp.einsum('bchw,c->bhw', x_nchw, ws[0]) + bs[0, 0]     # (B, H, W)
    s_gate = jax.nn.sigmoid(s_logit)
    return (x_nchw * c_gate[:, :, None, None]
            + x_nchw * s_gate[:, None, :, :])


# ---------------------------------------------------------------------------
# Demo / self-test
# ---------------------------------------------------------------------------

if __name__ == "__main__":
    def make_params(key, C, reduction):
        Cr = max(C // reduction, 1)
        k1, kb1, k2, kb2, ks, kbs = jax.random.split(key, 6)
        w1 = jax.random.normal(k1, (Cr, C), jnp.float32) * 0.1
        b1 = jax.random.normal(kb1, (Cr, 1), jnp.float32) * 0.1
        w2 = jax.random.normal(k2, (C, Cr), jnp.float32) * 0.1
        b2 = jax.random.normal(kb2, (C, 1), jnp.float32) * 0.1
        ws = jax.random.normal(ks, (1, C), jnp.float32) * 0.1
        bs = jax.random.normal(kbs, (1, 1), jnp.float32) * 0.1
        return w1, b1, w2, b2, ws, bs

    key = jax.random.PRNGKey(0)
    k0, k1, k2, k3 = jax.random.split(key, 4)

    # Case 1: C=128, H=W=16 -> HW=256.  Exercises the fused residency path
    # (grid=(B,), pool in-kernel) and the tiled fallback.
    B, C, H, W = 2, 128, 16, 16
    x = jax.random.normal(k0, (B, C, H, W), dtype=jnp.float32)
    params = make_params(k1, C, 16)
    ref = jax.block_until_ready(_reference_scse(x, *params))

    out_fused = jax.block_until_ready(scse_attention(x, *params, fuse=True))
    np.testing.assert_allclose(np.asarray(out_fused), np.asarray(ref),
                               rtol=2e-5, atol=2e-5)

    out_tiled = jax.block_until_ready(scse_attention(x, *params, fuse=False))
    np.testing.assert_allclose(np.asarray(out_tiled), np.asarray(ref),
                               rtol=2e-5, atol=2e-5)

    # Case 2: awkward spatial size H=W=30 -> HW=900 (not a multiple of 128).
    # Fused path uses a full-width (C, 900) block; tiled path (tile_hw=512)
    # exercises a masked final tile with a lane-dense 128-multiple tile.
    B2, C2, H2, W2 = 2, 64, 30, 30
    x2 = jax.random.normal(k2, (B2, C2, H2, W2), dtype=jnp.float32)
    params2 = make_params(k3, C2, 16)
    ref2 = jax.block_until_ready(_reference_scse(x2, *params2))

    out2_f = jax.block_until_ready(scse_attention(x2, *params2, fuse=True))
    np.testing.assert_allclose(np.asarray(out2_f), np.asarray(ref2),
                               rtol=2e-5, atol=2e-5)

    out2_t = jax.block_until_ready(scse_attention(x2, *params2, fuse=False,
                                                  tile_hw=512))
    np.testing.assert_allclose(np.asarray(out2_t), np.asarray(ref2),
                               rtol=2e-5, atol=2e-5)

    print("KERNEL_OK")
</pallas_src>

<mosaic_0001>
module attributes {stable_mosaic.version = 11 : i64} {
  func.func @_scse_fused_kernel(%arg0: i32, %arg1: memref<1x128x256xf32, #tpu.memory_space<vmem>>, %arg2: memref<8x128xf32, #tpu.memory_space<vmem>>, %arg3: memref<8x1xf32, #tpu.memory_space<vmem>>, %arg4: memref<128x8xf32, #tpu.memory_space<vmem>>, %arg5: memref<128x1xf32, #tpu.memory_space<vmem>>, %arg6: memref<1x128xf32, #tpu.memory_space<vmem>>, %arg7: memref<1x1xf32, #tpu.memory_space<smem>>, %arg8: memref<1x128x256xf32, #tpu.memory_space<vmem>>) attributes {dimension_semantics = [#tpu.dimension_semantics<parallel>], iteration_bounds = array<i64: 2>, scalar_prefetch = 0 : i64, scratch_operands = 0 : i64, tpu.core_type = #tpu.core_type<tc>, window_params = [{transform_indices = @transform_0, window_bounds = array<i64: 1, 128, 256>}, {pipeline_mode = #tpu.pipeline_mode<synchronous>, transform_indices = @transform_1, window_bounds = array<i64: 8, 128>}, {pipeline_mode = #tpu.pipeline_mode<synchronous>, transform_indices = @transform_2, window_bounds = array<i64: 8, 1>}, {pipeline_mode = #tpu.pipeline_mode<synchronous>, transform_indices = @transform_3, window_bounds = array<i64: 128, 8>}, {pipeline_mode = #tpu.pipeline_mode<synchronous>, transform_indices = @transform_4, window_bounds = array<i64: 128, 1>}, {pipeline_mode = #tpu.pipeline_mode<synchronous>, transform_indices = @transform_5, window_bounds = array<i64: 1, 128>}, {transform_indices = @transform_6, window_bounds = array<i64: 1, 1>}, {transform_indices = @transform_7, window_bounds = array<i64: 1, 128, 256>}]} {
    %c0 = arith.constant 0 : index
    %c0_0 = arith.constant 0 : index
    %c0_1 = arith.constant 0 : index
    %0 = vector.load %arg1[%c0, %c0_0, %c0_1] : memref<1x128x256xf32, #tpu.memory_space<vmem>>, vector<1x128x256xf32>
    %1 = vector.shape_cast %0 : vector<1x128x256xf32> to vector<128x256xf32>
    %cst = arith.constant dense<0.000000e+00> : vector<128xf32>
    %2 = vector.multi_reduction <add>, %1, %cst [1] : vector<128x256xf32> to vector<128xf32>
    %3 = vector.shape_cast %2 : vector<128xf32> to vector<128x1xf32>
    %cst_2 = arith.constant 3.906250e-03 : f32
    %4 = vector.broadcast %cst_2 : f32 to vector<128x1xf32>
    %5 = arith.mulf %3, %4 : vector<128x1xf32>
    %c0_3 = arith.constant 0 : index
    %c0_4 = arith.constant 0 : index
    %6 = vector.load %arg2[%c0_3, %c0_4] : memref<8x128xf32, #tpu.memory_space<vmem>>, vector<8x128xf32>
    %cst_5 = arith.constant dense<0.000000e+00> : vector<8x1xf32>
    %7 = tpu.matmul %6, %5, %cst_5 {dimension_numbers = #tpu.dot_dimension_numbers<[1], [0], [0], [1], [0, 0, 1, 1], [], []>} : vector<8x128xf32>, vector<128x1xf32>, vector<8x1xf32> -> vector<8x1xf32>
    %c0_6 = arith.constant 0 : index
    %c0_7 = arith.constant 0 : index
    %8 = vector.load %arg3[%c0_6, %c0_7] : memref<8x1xf32, #tpu.memory_space<vmem>>, vector<8x1xf32>
    %9 = arith.addf %7, %8 : vector<8x1xf32>
    %cst_8 = arith.constant 0.000000e+00 : f32
    %10 = vector.broadcast %cst_8 : f32 to vector<8x1xf32>
    %11 = arith.maximumf %9, %10 : vector<8x1xf32>
    %c0_9 = arith.constant 0 : index
    %c0_10 = arith.constant 0 : index
    %12 = vector.load %arg4[%c0_9, %c0_10] : memref<128x8xf32, #tpu.memory_space<vmem>>, vector<128x8xf32>
    %cst_11 = arith.constant dense<0.000000e+00> : vector<128x1xf32>
    %13 = tpu.matmul %12, %11, %cst_11 {dimension_numbers = #tpu.dot_dimension_numbers<[1], [0], [0], [1], [0, 0, 1, 1], [], []>} : vector<128x8xf32>, vector<8x1xf32>, vector<128x1xf32> -> vector<128x1xf32>
    %c0_12 = arith.constant 0 : index
    %c0_13 = arith.constant 0 : index
    %14 = vector.load %arg5[%c0_12, %c0_13] : memref<128x1xf32, #tpu.memory_space<vmem>>, vector<128x1xf32>
    %15 = arith.addf %13, %14 : vector<128x1xf32>
    %16 = arith.negf %15 : vector<128x1xf32>
    %17 = math.exp %16 : vector<128x1xf32>
    %cst_14 = arith.constant 1.000000e+00 : f32
    %18 = vector.broadcast %cst_14 : f32 to vector<128x1xf32>
    %19 = arith.addf %18, %17 : vector<128x1xf32>
    %20 = arith.divf %18, %19 : vector<128x1xf32>
    %c0_15 = arith.constant 0 : index
    %c0_16 = arith.constant 0 : index
    %21 = vector.load %arg6[%c0_15, %c0_16] : memref<1x128xf32, #tpu.memory_space<vmem>>, vector<1x128xf32>
    %cst_17 = arith.constant dense<0.000000e+00> : vector<1x256xf32>
    %22 = tpu.matmul %21, %1, %cst_17 {dimension_numbers = #tpu.dot_dimension_numbers<[1], [0], [0], [1], [0, 0, 1, 1], [], []>} : vector<1x128xf32>, vector<128x256xf32>, vector<1x256xf32> -> vector<1x256xf32>
    %c0_18 = arith.constant 0 : index
    %c0_19 = arith.constant 0 : index
    %23 = memref.load %arg7[%c0_18, %c0_19] : memref<1x1xf32, #tpu.memory_space<smem>>
    %24 = vector.broadcast %23 : f32 to vector<1x256xf32>
    %25 = arith.addf %22, %24 : vector<1x256xf32>
    %26 = arith.negf %25 : vector<1x256xf32>
    %27 = math.exp %26 : vector<1x256xf32>
    %cst_20 = arith.constant 1.000000e+00 : f32
    %28 = vector.broadcast %cst_20 : f32 to vector<1x256xf32>
    %29 = arith.addf %28, %27 : vector<1x256xf32>
    %30 = arith.divf %28, %29 : vector<1x256xf32>
    %31 = vector.broadcast %20 : vector<128x1xf32> to vector<128x256xf32>
    %32 = vector.broadcast %30 : vector<1x256xf32> to vector<128x256xf32>
    %33 = arith.addf %31, %32 : vector<128x256xf32>
    %34 = arith.mulf %1, %33 : vector<128x256xf32>
    %c0_21 = arith.constant 0 : index
    %c0_22 = arith.constant 0 : index
    %c0_23 = arith.constant 0 : index
    %35 = vector.load %arg8[%c0_21, %c0_22, %c0_23] : memref<1x128x256xf32, #tpu.memory_space<vmem>>, vector<1x128x256xf32>
    %36 = vector.shape_cast %35 : vector<1x128x256xf32> to vector<128x256xf32>
    %37 = vector.shape_cast %34 : vector<128x256xf32> to vector<1x128x256xf32>
    tpu.vector_store %arg8[%c0_21, %c0_22, %c0_23], %37 {strides = array<i32>} : memref<1x128x256xf32, #tpu.memory_space<vmem>>, vector<1x128x256xf32>,
    return
  }
  func.func @transform_0(%arg0: i32) -> (i32, i32, i32) {
    %c0_i32 = arith.constant 0 : i32
    %c0_i32_0 = arith.constant 0 : i32
    %c0_i32_1 = arith.constant 0 : i32
    return %arg0, %c0_i32, %c0_i32_0 : i32, i32, i32
  }
  func.func @transform_1(%arg0: i32) -> (i32, i32) {
    %c0_i32 = arith.constant 0 : i32
    %c0_i32_0 = arith.constant 0 : i32
    %c0_i32_1 = arith.constant 0 : i32
    return %c0_i32, %c0_i32_0 : i32, i32
  }
  func.func @transform_2(%arg0: i32) -> (i32, i32) {
    %c0_i32 = arith.constant 0 : i32
    %c0_i32_0 = arith.constant 0 : i32
    %c0_i32_1 = arith.constant 0 : i32
    return %c0_i32, %c0_i32_0 : i32, i32
  }
  func.func @transform_3(%arg0: i32) -> (i32, i32) {
    %c0_i32 = arith.constant 0 : i32
    %c0_i32_0 = arith.constant 0 : i32
    %c0_i32_1 = arith.constant 0 : i32
    return %c0_i32, %c0_i32_0 : i32, i32
  }
  func.func @transform_4(%arg0: i32) -> (i32, i32) {
    %c0_i32 = arith.constant 0 : i32
    %c0_i32_0 = arith.constant 0 : i32
    %c0_i32_1 = arith.constant 0 : i32
    return %c0_i32, %c0_i32_0 : i32, i32
  }
  func.func @transform_5(%arg0: i32) -> (i32, i32) {
    %c0_i32 = arith.constant 0 : i32
    %c0_i32_0 = arith.constant 0 : i32
    %c0_i32_1 = arith.constant 0 : i32
    return %c0_i32, %c0_i32_0 : i32, i32
  }
  func.func @transform_6(%arg0: i32) -> (i32, i32) {
    %c0_i32 = arith.constant 0 : i32
    %c0_i32_0 = arith.constant 0 : i32
    %c0_i32_1 = arith.constant 0 : i32
    return %c0_i32, %c0_i32_0 : i32, i32
  }
  func.func @transform_7(%arg0: i32) -> (i32, i32, i32) {
    %c0_i32 = arith.constant 0 : i32
    %c0_i32_0 = arith.constant 0 : i32
    %c0_i32_1 = arith.constant 0 : i32
    return %arg0, %c0_i32, %c0_i32_0 : i32, i32, i32
  }
}

</mosaic_0001>

<llo_original>
// kernel: tpu_custom_call.1
$region0: #{tpu_custom_call.1}
  #allocation0 [shape = 'u32[]', space=smem, size = 0x4, offset = 0x4, fixed_abs, tag = 'smem constant byte address 0x4 - core index']
  #allocation1 [shape = 'u32[72,128]{1,0:T(1,128)}', space=vmem, size = 0x9000, scoped, tag = 'internal scratch']
  #allocation2 [shape = 'f32[1,1]{1,0:T(1,128)S(6)}', space=smem, size = 0x200, scoped, tag = 'scoped memory for tpu_custom_call.1']
  %s0 = inlined_call_operand.hbm [shape: f32[2,128,256], index: 0, kind: input, shape index: {}]
  %s1 = inlined_call_operand.vmem [shape: f32[8,128], index: 1, kind: input, shape index: {}]
  %s2 = inlined_call_operand.vmem [shape: f32[8,1], index: 2, kind: input, shape index: {}]
  %s3 = inlined_call_operand.vmem [shape: f32[128,8], index: 3, kind: input, shape index: {}]
  %s4 = inlined_call_operand.vmem [shape: f32[128,1], index: 4, kind: input, shape index: {}]
  %s5 = inlined_call_operand.vmem [shape: f32[1,128], index: 5, kind: input, shape index: {}]
  %s6 = inlined_call_operand.<no memory space> [shape: f32[1,1], index: 6, kind: input, shape index: {}]
  %s7 = inlined_call_operand.hbm [shape: f32[2,128,256], index: 7, kind: output, shape index: {}]
  %s8 = sld [smem:[#allocation0]]
  $region65: #{tpu_custom_call.1} parent=0
    _
  %s10 = ssub.s32 1, %s8
  %s11 = scalar_select 0, %s10, %s8
  %12 = sst [smem:[#allocation2]] %s6
  $region1: #{tpu_custom_call.1} parent=0
    #allocation3 [shape = 'u8[262144]{0}', space=vmem, size = 0x40000, scoped, tag = 'input window, operand 0']
    #allocation4 [shape = 's32[2]{0}', space=sflag, size = 0x8, scoped, tag = 'scoped memory for tpu_custom_call.1']
    #allocation5 [shape = 's32[2]{0}', space=sflag, size = 0x8, scoped, tag = 'scoped memory for tpu_custom_call.1']
    #allocation6 [shape = 'u8[262144]{0}', space=vmem, size = 0x40000, scoped, tag = 'output window, operand 0']
    %13 = vsyncpa [#allocation4], 0
    %s14 = scalar_lea.sflag [#allocation4], 1
    %15 = vsyncpa %s14, 0
    %16 = vsyncpa [#allocation5], 0
    %s17 = scalar_lea.sflag [#allocation5], 1
    %18 = vsyncpa %s17, 0
    loop: start=0, step=1, limit=4
    $region2: #{tpu_custom_call.1} parent=1 // loop_pre_header
      _
    $region3: #{tpu_custom_call.1} parent=1 // loop_header
      %s20 = sphi 0, %s24
      %p21 = scmp.ge.s32.totalorder %s20, 4
      %s30 = sphi 0, %s32
      %s33 = sphi 0, %s30
      %s34 = sphi 0, %s33
      %s50 = sphi 0, %s34
      %s54 = sphi 0, %s54
      %s56 = sphi 0, %s54
      %s57 = sphi 0, %s56
      %s71 = sphi 0, %s57
      %s75 = sphi 0, %s75
      %s77 = sphi 0, %s75
      %s78 = sphi 0, %s77
      %s92 = sphi 0, %s78
      %s96 = sphi 0, %s96
      %s98 = sphi 0, %s96
      %s99 = sphi 0, %s98
      %s113 = sphi 0, %s99
      %s117 = sphi 0, %s117
      %s119 = sphi 0, %s117
      %s120 = sphi 0, %s119
      %s134 = sphi 0, %s120
      %s138 = sphi 0, %s138
      %s140 = sphi 0, %s138
      %s141 = sphi 0, %s140
      %s155 = sphi 0, %s141
      %s159 = sphi 0, %s159
      %s161 = sphi 0, %s159
      %s162 = sphi 0, %s161
      %s176 = sphi 0, %s162
      %s182 = sphi 0, %s184
      %s185 = sphi 0, %s182
      %s186 = sphi 0, %s185
      %s202 = sphi 0, %s186
    $region4: #{tpu_custom_call.1} parent=1 // loop_header_branch
      %23 = sbr.rel (%p21) target = $region8
    $region5: #{tpu_custom_call.1} parent=1 // loop_body
      %s25 = ssub.s32 %s20, 1
      %s26 = ssub.s32 %s20, 2
      %s27 = sadd.s32 %s20, 1
      %s28 = ssub.s32 %s20, %s27
      %p29 = scmp.eq.s32.totalorder %s28, 0
      %s31 = sadd.s32 %s30, 1
      %s32 = scalar_select %p29, %s30, %s31
      %p35 = pneg %p29
      %p36 = scmp.eq.s32.totalorder %s20, 1
      %p37 = por %p35, %p36
      %p38 = scmp.ne.s32.totalorder %s30, %s33
      %p39 = scmp.eq.s32.totalorder %s20, 0
      %p40 = por %p38, %p39
      %p41 = scmp.ne.s32.totalorder %s30, %s33
      %p42 = scmp.eq.s32.totalorder %s25, 1
      %p43 = por %p41, %p42
      %p44 = scmp.ne.s32.totalorder %s33, %s34
      %p45 = scmp.eq.s32.totalorder %s25, 0
      %p46 = por %p44, %p45
      %p47 = scmp.ne.s32.totalorder %s33, %s34
      %p48 = scmp.eq.s32.totalorder %s26, 1
      %p49 = por %p47, %p48
      %p51 = scmp.ne.s32.totalorder %s34, %s50
      %p52 = scmp.eq.s32.totalorder %s26, 0
      %p53 = por %p51, %p52
      %s55 = sadd.s32 %s54, 1
      %p58 = scmp.eq.s32.totalorder %s20, 1
      %p59 = scmp.ne.s32.totalorder %s54, %s56
      %p60 = scmp.eq.s32.totalorder %s20, 0
      %p61 = por %p59, %p60
      %p62 = scmp.ne.s32.totalorder %s54, %s56
      %p63 = scmp.eq.s32.totalorder %s25, 1
      %p64 = por %p62, %p63
      %p65 = scmp.ne.s32.totalorder %s56, %s57
      %p66 = scmp.eq.s32.totalorder %s25, 0
      %p67 = por %p65, %p66
      %p68 = scmp.ne.s32.totalorder %s56, %s57
      %p69 = scmp.eq.s32.totalorder %s26, 1
      %p70 = por %p68, %p69
      %p72 = scmp.ne.s32.totalorder %s57, %s71
      %p73 = scmp.eq.s32.totalorder %s26, 0
      %p74 = por %p72, %p73
      %s76 = sadd.s32 %s75, 1
      %p79 = scmp.eq.s32.totalorder %s20, 1
      %p80 = scmp.ne.s32.totalorder %s75, %s77
      %p81 = scmp.eq.s32.totalorder %s20, 0
      %p82 = por %p80, %p81
      %p83 = scmp.ne.s32.totalorder %s75, %s77
      %p84 = scmp.eq.s32.totalorder %s25, 1
      %p85 = por %p83, %p84
      %p86 = scmp.ne.s32.totalorder %s77, %s78
      %p87 = scmp.eq.s32.totalorder %s25, 0
      %p88 = por %p86, %p87
      %p89 = scmp.ne.s32.totalorder %s77, %s78
      %p90 = scmp.eq.s32.totalorder %s26, 1
      %p91 = por %p89, %p90
      %p93 = scmp.ne.s32.totalorder %s78, %s92
      %p94 = scmp.eq.s32.totalorder %s26, 0
      %p95 = por %p93, %p94
      %s97 = sadd.s32 %s96, 1
      %p100 = scmp.eq.s32.totalorder %s20, 1
      %p101 = scmp.ne.s32.totalorder %s96, %s98
      %p102 = scmp.eq.s32.totalorder %s20, 0
      %p103 = por %p101, %p102
      %p104 = scmp.ne.s32.totalorder %s96, %s98
      %p105 = scmp.eq.s32.totalorder %s25, 1
      %p106 = por %p104, %p105
      %p107 = scmp.ne.s32.totalorder %s98, %s99
      %p108 = scmp.eq.s32.totalorder %s25, 0
      %p109 = por %p107, %p108
      %p110 = scmp.ne.s32.totalorder %s98, %s99
      %p111 = scmp.eq.s32.totalorder %s26, 1
      %p112 = por %p110, %p111
      %p114 = scmp.ne.s32.totalorder %s99, %s113
      %p115 = scmp.eq.s32.totalorder %s26, 0
      %p116 = por %p114, %p115
      %s118 = sadd.s32 %s117, 1
      %p121 = scmp.eq.s32.totalorder %s20, 1
      %p122 = scmp.ne.s32.totalorder %s117, %s119
      %p123 = scmp.eq.s32.totalorder %s20, 0
      %p124 = por %p122, %p123
      %p125 = scmp.ne.s32.totalorder %s117, %s119
      %p126 = scmp.eq.s32.totalorder %s25, 1
      %p127 = por %p125, %p126
      %p128 = scmp.ne.s32.totalorder %s119, %s120
      %p129 = scmp.eq.s32.totalorder %s25, 0
      %p130 = por %p128, %p129
      %p131 = scmp.ne.s32.totalorder %s119, %s120
      %p132 = scmp.eq.s32.totalorder %s26, 1
      %p133 = por %p131, %p132
      %p135 = scmp.ne.s32.totalorder %s120, %s134
      %p136 = scmp.eq.s32.totalorder %s26, 0
      %p137 = por %p135, %p136
      %s139 = sadd.s32 %s138, 1
      %p142 = scmp.eq.s32.totalorder %s20, 1
      %p143 = scmp.ne.s32.totalorder %s138, %s140
      %p144 = scmp.eq.s32.totalorder %s20, 0
      %p145 = por %p143, %p144
      %p146 = scmp.ne.s32.totalorder %s138, %s140
      %p147 = scmp.eq.s32.totalorder %s25, 1
      %p148 = por %p146, %p147
      %p149 = scmp.ne.s32.totalorder %s140, %s141
      %p150 = scmp.eq.s32.totalorder %s25, 0
      %p151 = por %p149, %p150
      %p152 = scmp.ne.s32.totalorder %s140, %s141
      %p153 = scmp.eq.s32.totalorder %s26, 1
      %p154 = por %p152, %p153
      %p156 = scmp.ne.s32.totalorder %s141, %s155
      %p157 = scmp.eq.s32.totalorder %s26, 0
      %p158 = por %p156, %p157
      %s160 = sadd.s32 %s159, 1
      %p163 = scmp.eq.s32.totalorder %s20, 1
      %p164 = scmp.ne.s32.totalorder %s159, %s161
      %p165 = scmp.eq.s32.totalorder %s20, 0
      %p166 = por %p164, %p165
      %p167 = scmp.ne.s32.totalorder %s159, %s161
      %p168 = scmp.eq.s32.totalorder %s25, 1
      %p169 = por %p167, %p168
      %p170 = scmp.ne.s32.totalorder %s161, %s162
      %p171 = scmp.eq.s32.totalorder %s25, 0
      %p172 = por %p170, %p171
      %p173 = scmp.ne.s32.totalorder %s161, %s162
      %p174 = scmp.eq.s32.totalorder %s26, 1
      %p175 = por %p173, %p174
      %p177 = scmp.ne.s32.totalorder %s162, %s176
      %p178 = scmp.eq.s32.totalorder %s26, 0
      %p179 = por %p177, %p178
      %s180 = ssub.s32 %s20, %s27
      %p181 = scmp.eq.s32.totalorder %s180, 0
      %s183 = sadd.s32 %s182, 1
      %s184 = scalar_select %p181, %s182, %s183
      %p187 = pneg %p181
      %p188 = scmp.eq.s32.totalorder %s20, 1
      %p189 = por %p187, %p188
      %p190 = scmp.ne.s32.totalorder %s182, %s185
      %p191 = scmp.eq.s32.totalorder %s20, 0
      %p192 = por %p190, %p191
      %p193 = scmp.ne.s32.totalorder %s182, %s185
      %p194 = scmp.eq.s32.totalorder %s25, 1
      %p195 = por %p193, %p194
      %p196 = scmp.ne.s32.totalorder %s185, %s186
      %p197 = scmp.eq.s32.totalorder %s25, 0
      %p198 = por %p196, %p197
      %p199 = scmp.ne.s32.totalorder %s185, %s186
      %p200 = scmp.eq.s32.totalorder %s26, 1
      %p201 = por %p199, %p200
      %p203 = scmp.ne.s32.totalorder %s186, %s202
      %p204 = scmp.eq.s32.totalorder %s26, 0
      %p205 = por %p203, %p204
      %p206 = scmp.le.s32.totalorder 1, %s20
      %p207 = scmp.lt.s32.totalorder %s20, 3
      %p208 = pnand %p206, %p207
      %p209 = pneg %p208
      // Predicated region
      $region9: #{tpu_custom_call.1} parent=5 // pred_check
        _
      $region10: #{tpu_custom_call.1} parent=5 // pred_check_branch
        %211 = sbr.rel (%p208) target = $region12
      $region11: #{tpu_custom_call.1} parent=5 // pred_region
        %s212 = ssub.s32 %s20, 1
        // Predicated region
        $region13: #{tpu_custom_call.1} parent=11 // pred_check
          %p213 = pneg %p67
        $region14: #{tpu_custom_call.1} parent=11 // pred_check_branch
          %215 = sbr.rel (%p213) target = $region16
        $region15: #{tpu_custom_call.1} parent=11 // pred_region
          _
        $region16: #{tpu_custom_call.1} parent=11 // pred_fallthru
          _
        // Predicated region
        $region17: #{tpu_custom_call.1} parent=11 // pred_check
          %p216 = pneg %p88
        $region18: #{tpu_custom_call.1} parent=11 // pred_check_branch
          %218 = sbr.rel (%p216) target = $region20
        $region19: #{tpu_custom_call.1} parent=11 // pred_region
          _
        $region20: #{tpu_custom_call.1} parent=11 // pred_fallthru
          _
        // Predicated region
        $region21: #{tpu_custom_call.1} parent=11 // pred_check
          %p219 = pneg %p109
        $region22: #{tpu_custom_call.1} parent=11 // pred_check_branch
          %221 = sbr.rel (%p219) target = $region24
        $region23: #{tpu_custom_call.1} parent=11 // pred_region
          _
        $region24: #{tpu_custom_call.1} parent=11 // pred_fallthru
          _
        // Predicated region
        $region25: #{tpu_custom_call.1} parent=11 // pred_check
          %p222 = pneg %p130
        $region26: #{tpu_custom_call.1} parent=11 // pred_check_branch
          %224 = sbr.rel (%p222) target = $region28
        $region27: #{tpu_custom_call.1} parent=11 // pred_region
          _
        $region28: #{tpu_custom_call.1} parent=11 // pred_fallthru
          _
        // Predicated region
        $region29: #{tpu_custom_call.1} parent=11 // pred_check
          %p225 = pneg %p151
        $region30: #{tpu_custom_call.1} parent=11 // pred_check_branch
          %227 = sbr.rel (%p225) target = $region32
        $region31: #{tpu_custom_call.1} parent=11 // pred_region
          _
        $region32: #{tpu_custom_call.1} parent=11 // pred_fallthru
          _
        // Predicated region
        $region33: #{tpu_custom_call.1} parent=11 // pred_check
          %p228 = pneg %p172
        $region34: #{tpu_custom_call.1} parent=11 // pred_check_branch
          %230 = sbr.rel (%p228) target = $region36
        $region35: #{tpu_custom_call.1} parent=11 // pred_region
          _
        $region36: #{tpu_custom_call.1} parent=11 // pred_fallthru
          _
      $region12: #{tpu_custom_call.1} parent=5 // pred_fallthru
        _
      %p231 = scmp.lt.s32.totalorder %s20, 2
      // Predicated region
      $region37: #{tpu_custom_call.1} parent=5 // pred_check
        %p232 = pneg %p231
      $region38: #{tpu_custom_call.1} parent=5 // pred_check_branch
        %234 = sbr.rel (%p232) target = $region40
      $region39: #{tpu_custom_call.1} parent=5 // pred_region
        // Predicated region
        $region41: #{tpu_custom_call.1} parent=39 // pred_check
          %p235 = pneg %p40
        $region42: #{tpu_custom_call.1} parent=39 // pred_check_branch
          %237 = sbr.rel (%p235) target = $region44
        $region43: #{tpu_custom_call.1} parent=39 // pred_region
          %s238 = sand.u32 %s30, 1
          %s239 = scalar_lea.sflag [#allocation4], %s238
          %s240 = sand.u32 %s30, 1
          %s241 = smul.addr %s240, 256
          %s242 = scalar_lea.vmem [#allocation3], %s241
          %244 = vsyncadd %s239, 0
          %s245 = smul.addr %s20, 32
          %s246 = smul.addr %s245, 8
          %s247 = scalar_lea.hbm %s0, %s246
          %s248 = sshll.u32 %s247, 4
          %s249 = int_to_ptr.hbm [resolvable:$true] %s248
          %s250 = sshll.u32 %s242, 4
          %s251 = int_to_ptr.vmem [resolvable:$true] %s250
          %256 = dma.hbm_to_vmem [thread:$0]  %s249, 4096, %s251, %s239, 256, 256, 16
        $region44: #{tpu_custom_call.1} parent=39 // pred_fallthru
          _
      $region40: #{tpu_custom_call.1} parent=5 // pred_fallthru
        _
      %p257 = scmp.le.s32.totalorder 1, %s20
      %p258 = scmp.lt.s32.totalorder %s20, 3
      %p259 = pnand %p257, %p258
      %p260 = pneg %p259
      // Predicated region
      $region45: #{tpu_custom_call.1} parent=5 // pred_check
        _
      $region46: #{tpu_custom_call.1} parent=5 // pred_check_branch
        %262 = sbr.rel (%p259) target = $region48
      $region47: #{tpu_custom_call.1} parent=5 // pred_region
        %s263 = ssub.s32 %s20, 1
        %s264 = sand.u32 %s33, 1
        %s265 = scalar_lea.sflag [#allocation4], %s264
        %s266 = sand.u32 %s33, 1
        %s267 = smul.addr %s266, 256
        %s268 = scalar_lea.vmem [#allocation3], %s267
        // Predicated region
        $region49: #{tpu_custom_call.1} parent=47 // pred_check
          %p269 = pneg %p46
        $region50: #{tpu_custom_call.1} parent=47 // pred_check_branch
          %271 = sbr.rel (%p269) target = $region52
        $region51: #{tpu_custom_call.1} parent=47 // pred_region
          %273 = dma.done %s265, 4096
        $region52: #{tpu_custom_call.1} parent=47 // pred_fallthru
          _
        %s274 = sand.u32 %s33, 1
        %s275 = scalar_lea.sflag [#allocation4], %s274
        %s276 = sand.u32 %s33, 1
        %s277 = smul.addr %s276, 256
        %s278 = scalar_lea.vmem [#allocation3], %s277
        %p279 = pneg %p46
        %p280 = pneg %p43
        %p281 = pneg %p67
        %p282 = pneg %p64
        %p283 = pneg %p88
        %p284 = pneg %p85
        %p285 = pneg %p109
        %p286 = pneg %p106
        %p287 = pneg %p130
        %p288 = pneg %p127
        %p289 = pneg %p151
        %p290 = pneg %p148
        %p291 = pneg %p172
        %p292 = pneg %p169
        %p293 = pneg %p198
        %p294 = pneg %p195
        %s295 = sand.u32 %s185, 1
        %s296 = scalar_lea.sflag [#allocation5], %s295
        %s297 = sand.u32 %s185, 1
        %s298 = smul.addr %s297, 256
        %s299 = scalar_lea.vmem [#allocation6], %s298
        %v300 = vld [vmem:[%s268] sm:$0xff]
        %v301 = vld [vmem:[%s268 + $0x8] sm:$0xff]
        %v302 = vld [vmem:[%s268 + $0x10] sm:$0xff]
        %v303 = vld [vmem:[%s268 + $0x18] sm:$0xff]
        %v304 = vld [vmem:[%s268 + $0x20] sm:$0xff]
        %v305 = vld [vmem:[%s268 + $0x28] sm:$0xff]
        %v306 = vld [vmem:[%s268 + $0x30] sm:$0xff]
        %v307 = vld [vmem:[%s268 + $0x38] sm:$0xff]
        %v308 = vld [vmem:[%s268 + $0x40] sm:$0xff]
        %v309 = vld [vmem:[%s268 + $0x48] sm:$0xff]
        %v310 = vld [vmem:[%s268 + $0x50] sm:$0xff]
        %v311 = vld [vmem:[%s268 + $0x58] sm:$0xff]
        %v312 = vld [vmem:[%s268 + $0x60] sm:$0xff]
        %v313 = vld [vmem:[%s268 + $0x68] sm:$0xff]
        %v314 = vld [vmem:[%s268 + $0x70] sm:$0xff]
        %v315 = vld [vmem:[%s268 + $0x78] sm:$0xff]
        %v316 = vld [vmem:[%s268 + $0x80] sm:$0xff]
        %v317 = vld [vmem:[%s268 + $0x88] sm:$0xff]
        %v318 = vld [vmem:[%s268 + $0x90] sm:$0xff]
        %v319 = vld [vmem:[%s268 + $0x98] sm:$0xff]
        %v320 = vld [vmem:[%s268 + $0xa0] sm:$0xff]
        %v321 = vld [vmem:[%s268 + $0xa8] sm:$0xff]
        %v322 = vld [vmem:[%s268 + $0xb0] sm:$0xff]
        %v323 = vld [vmem:[%s268 + $0xb8] sm:$0xff]
        %v324 = vld [vmem:[%s268 + $0xc0] sm:$0xff]
        %v325 = vld [vmem:[%s268 + $0xc8] sm:$0xff]
        %v326 = vld [vmem:[%s268 + $0xd0] sm:$0xff]
        %v327 = vld [vmem:[%s268 + $0xd8] sm:$0xff]
        %v328 = vld [vmem:[%s268 + $0xe0] sm:$0xff]
        %v329 = vld [vmem:[%s268 + $0xe8] sm:$0xff]
        %v330 = vld [vmem:[%s268 + $0xf0] sm:$0xff]
        %v331 = vld [vmem:[%s268 + $0xf8] sm:$0xff]
        %v332 = vadd.f32 %v300, %v301
        %333 = vadd.xlane.f32.xlu0 %v332
        %v334 = vpop.xlane.xlu0 %333
        %v335 = vadd.f32 %v302, %v303
        %336 = vadd.xlane.f32.xlu0 %v335
        %v337 = vpop.xlane.xlu0 %336
        %v338 = vadd.f32 %v304, %v305
        %339 = vadd.xlane.f32.xlu0 %v338
        %v340 = vpop.xlane.xlu0 %339
        %v341 = vadd.f32 %v306, %v307
        %342 = vadd.xlane.f32.xlu0 %v341
        %v343 = vpop.xlane.xlu0 %342
        %v344 = vadd.f32 %v308, %v309
        %345 = vadd.xlane.f32.xlu0 %v344
        %v346 = vpop.xlane.xlu0 %345
        %v347 = vadd.f32 %v310, %v311
        %348 = vadd.xlane.f32.xlu0 %v347
        %v349 = vpop.xlane.xlu0 %348
        %v350 = vadd.f32 %v312, %v313
        %351 = vadd.xlane.f32.xlu0 %v350
        %v352 = vpop.xlane.xlu0 %351
        %v353 = vadd.f32 %v314, %v315
        %354 = vadd.xlane.f32.xlu0 %v353
        %v355 = vpop.xlane.xlu0 %354
        %v356 = vadd.f32 %v316, %v317
        %357 = vadd.xlane.f32.xlu0 %v356
        %v358 = vpop.xlane.xlu0 %357
        %v359 = vadd.f32 %v318, %v319
        %360 = vadd.xlane.f32.xlu0 %v359
        %v361 = vpop.xlane.xlu0 %360
        %v362 = vadd.f32 %v320, %v321
        %363 = vadd.xlane.f32.xlu0 %v362
        %v364 = vpop.xlane.xlu0 %363
        %v365 = vadd.f32 %v322, %v323
        %366 = vadd.xlane.f32.xlu0 %v365
        %v367 = vpop.xlane.xlu0 %366
        %v368 = vadd.f32 %v324, %v325
        %369 = vadd.xlane.f32.xlu0 %v368
        %v370 = vpop.xlane.xlu0 %369
        %v371 = vadd.f32 %v326, %v327
        %372 = vadd.xlane.f32.xlu0 %v371
        %v373 = vpop.xlane.xlu0 %372
        %v374 = vadd.f32 %v328, %v329
        %375 = vadd.xlane.f32.xlu0 %v374
        %v376 = vpop.xlane.xlu0 %375
        %v377 = vadd.f32 %v330, %v331
        %378 = vadd.xlane.f32.xlu0 %v377
        %v379 = vpop.xlane.xlu0 %378
        %v380 = vmul.f32 %v334, 0.00390625
        %v381 = vmul.f32 %v337, 0.00390625
        %v382 = vmul.f32 %v340, 0.00390625
        %v383 = vmul.f32 %v343, 0.00390625
        %v384 = vmul.f32 %v346, 0.00390625
        %v385 = vmul.f32 %v349, 0.00390625
        %v386 = vmul.f32 %v352, 0.00390625
        %v387 = vmul.f32 %v355, 0.00390625
        %v388 = vmul.f32 %v358, 0.00390625
        %v389 = vmul.f32 %v361, 0.00390625
        %v390 = vmul.f32 %v364, 0.00390625
        %v391 = vmul.f32 %v367, 0.00390625
        %v392 = vmul.f32 %v370, 0.00390625
        %v393 = vmul.f32 %v373, 0.00390625
        %v394 = vmul.f32 %v376, 0.00390625
        %v395 = vmul.f32 %v379, 0.00390625
        %v396 = vld [vmem:[%s1] sm:$0xff]
        %v397 = vld [vmem:[%s2] sm:$0xff]
        %398 = vmatpush.msra.mxu0 %v395
        %399 = vmatpush.msra.mxu0 %v394
        %400 = vmatpush.msra.mxu0 %v393
        %401 = vmatpush.msra.mxu0 %v392
        %402 = vmatpush.msra.mxu0 %v391
        %403 = vmatpush.msra.mxu0 %v390
        %404 = vmatpush.msra.mxu0 %v389
        %405 = vmatpush.msra.mxu0 %v388
        %406 = vmatpush.msra.mxu0 %v387
        %407 = vmatpush.msra.mxu0 %v386
        %408 = vmatpush.msra.mxu0 %v385
        %409 = vmatpush.msra.mxu0 %v384
        %410 = vmatpush.msra.mxu0 %v383
        %411 = vmatpush.msra.mxu0 %v382
        %412 = vmatpush.msra.mxu0 %v381
        %413 = vmatpush.msra.mxu0 %v380
        %414 = vmatmul.f32.gmra.mxu0 %v396
        %v415 = vpop.f32.mrf.mxu0
        %v416 = vadd.f32 %v397, %v415
        %417 = vdwg.mxu0
        %v418 = vmax.f32 %v416, 0.0
        %v419 = vld [vmem:[%s3] sm:$0xff]
        %v420 = vld [vmem:[%s3 + $0x8] sm:$0xff]
        %v421 = vld [vmem:[%s3 + $0x10] sm:$0xff]
        %v422 = vld [vmem:[%s3 + $0x18] sm:$0xff]
        %v423 = vld [vmem:[%s3 + $0x20] sm:$0xff]
        %v424 = vld [vmem:[%s3 + $0x28] sm:$0xff]
        %v425 = vld [vmem:[%s3 + $0x30] sm:$0xff]
        %v426 = vld [vmem:[%s3 + $0x38] sm:$0xff]
        %v427 = vld [vmem:[%s3 + $0x40] sm:$0xff]
        %v428 = vld [vmem:[%s3 + $0x48] sm:$0xff]
        %v429 = vld [vmem:[%s3 + $0x50] sm:$0xff]
        %v430 = vld [vmem:[%s3 + $0x58] sm:$0xff]
        %v431 = vld [vmem:[%s3 + $0x60] sm:$0xff]
        %v432 = vld [vmem:[%s3 + $0x68] sm:$0xff]
        %v433 = vld [vmem:[%s3 + $0x70] sm:$0xff]
        %v434 = vld [vmem:[%s3 + $0x78] sm:$0xff]
        %v435 = vld [vmem:[%s4] sm:$0xff]
        %v436 = vld [vmem:[%s4 + $0x8] sm:$0xff]
        %v437 = vld [vmem:[%s4 + $0x10] sm:$0xff]
        %v438 = vld [vmem:[%s4 + $0x18] sm:$0xff]
        %v439 = vld [vmem:[%s4 + $0x20] sm:$0xff]
        %v440 = vld [vmem:[%s4 + $0x28] sm:$0xff]
        %v441 = vld [vmem:[%s4 + $0x30] sm:$0xff]
        %v442 = vld [vmem:[%s4 + $0x38] sm:$0xff]
        %v443 = vld [vmem:[%s4 + $0x40] sm:$0xff]
        %v444 = vld [vmem:[%s4 + $0x48] sm:$0xff]
        %v445 = vld [vmem:[%s4 + $0x50] sm:$0xff]
        %v446 = vld [vmem:[%s4 + $0x58] sm:$0xff]
        %v447 = vld [vmem:[%s4 + $0x60] sm:$0xff]
        %v448 = vld [vmem:[%s4 + $0x68] sm:$0xff]
        %v449 = vld [vmem:[%s4 + $0x70] sm:$0xff]
        %v450 = vld [vmem:[%s4 + $0x78] sm:$0xff]
        %vm451 = vcmask 64512
        %v453 = vsel %vm451, %v419, 0
        %v456 = vsel %vm451, %v420, 0
        %v459 = vsel %vm451, %v421, 0
        %v462 = vsel %vm451, %v422, 0
        %v465 = vsel %vm451, %v423, 0
        %v468 = vsel %vm451, %v424, 0
        %v471 = vsel %vm451, %v425, 0
        %v474 = vsel %vm451, %v426, 0
        %v477 = vsel %vm451, %v427, 0
        %v480 = vsel %vm451, %v428, 0
        %v483 = vsel %vm451, %v429, 0
        %v486 = vsel %vm451, %v430, 0
        %v489 = vsel %vm451, %v431, 0
        %v492 = vsel %vm451, %v432, 0
        %v495 = vsel %vm451, %v433, 0
        %v498 = vsel %vm451, %v434, 0
        %500 = vmatpush.msra.mxu0 0.0
        %501 = vmatpush.msra.mxu0 0.0
        %502 = vmatpush.msra.mxu0 0.0
        %503 = vmatpush.msra.mxu0 0.0
        %504 = vmatpush.msra.mxu0 0.0
        %505 = vmatpush.msra.mxu0 0.0
        %506 = vmatpush.msra.mxu0 0.0
        %507 = vmatpush.msra.mxu0 0.0
        %508 = vmatpush.msra.mxu0 0.0
        %509 = vmatpush.msra.mxu0 0.0
        %510 = vmatpush.msra.mxu0 0.0
        %511 = vmatpush.msra.mxu0 0.0
        %512 = vmatpush.msra.mxu0 0.0
        %513 = vmatpush.msra.mxu0 0.0
        %514 = vmatpush.msra.mxu0 0.0
        %515 = vmatpush.msra.mxu0 %v418
        %516 = vmatmul.f32.gmra.mxu0 %v453
        %v517 = vpop.f32.mrf.mxu0
        %v518 = vadd.f32 %v435, %v517
        %519 = vmatmul.f32.gmra.mxu0 %v456
        %v520 = vpop.f32.mrf.mxu0
        %v521 = vadd.f32 %v436, %v520
        %522 = vmatmul.f32.gmra.mxu0 %v459
        %v523 = vpop.f32.mrf.mxu0
        %v524 = vadd.f32 %v437, %v523
        %525 = vmatmul.f32.gmra.mxu0 %v462
        %v526 = vpop.f32.mrf.mxu0
        %v527 = vadd.f32 %v438, %v526
        %528 = vmatmul.f32.gmra.mxu0 %v465
        %v529 = vpop.f32.mrf.mxu0
        %v530 = vadd.f32 %v439, %v529
        %531 = vmatmul.f32.gmra.mxu0 %v468
        %v532 = vpop.f32.mrf.mxu0
        %v533 = vadd.f32 %v440, %v532
        %534 = vmatmul.f32.gmra.mxu0 %v471
        %v535 = vpop.f32.mrf.mxu0
        %v536 = vadd.f32 %v441, %v535
        %537 = vmatmul.f32.gmra.mxu0 %v474
        %v538 = vpop.f32.mrf.mxu0
        %v539 = vadd.f32 %v442, %v538
        %540 = vmatmul.f32.gmra.mxu0 %v477
        %v541 = vpop.f32.mrf.mxu0
        %v542 = vadd.f32 %v443, %v541
        %543 = vmatmul.f32.gmra.mxu0 %v480
        %v544 = vpop.f32.mrf.mxu0
        %v545 = vadd.f32 %v444, %v544
        %546 = vmatmul.f32.gmra.mxu0 %v483
        %v547 = vpop.f32.mrf.mxu0
        %v548 = vadd.f32 %v445, %v547
        %549 = vmatmul.f32.gmra.mxu0 %v486
        %v550 = vpop.f32.mrf.mxu0
        %v551 = vadd.f32 %v446, %v550
        %552 = vmatmul.f32.gmra.mxu0 %v489
        %v553 = vpop.f32.mrf.mxu0
        %v554 = vadd.f32 %v447, %v553
        %555 = vmatmul.f32.gmra.mxu0 %v492
        %v556 = vpop.f32.mrf.mxu0
        %v557 = vadd.f32 %v448, %v556
        %558 = vmatmul.f32.gmra.mxu0 %v495
        %v559 = vpop.f32.mrf.mxu0
        %v560 = vadd.f32 %v449, %v559
        %561 = vmatmul.f32.gmra.mxu0 %v498
        %v562 = vpop.f32.mrf.mxu0
        %v563 = vadd.f32 %v450, %v562
        %564 = vdwg.mxu0
        %v565 = vxor.u32 %v518, 2147483648
        %v566 = vxor.u32 %v521, 2147483648
        %v567 = vxor.u32 %v524, 2147483648
        %v568 = vxor.u32 %v527, 2147483648
        %v569 = vxor.u32 %v530, 2147483648
        %v570 = vxor.u32 %v533, 2147483648
        %v571 = vxor.u32 %v536, 2147483648
        %v572 = vxor.u32 %v539, 2147483648
        %v573 = vxor.u32 %v542, 2147483648
        %v574 = vxor.u32 %v545, 2147483648
        %v575 = vxor.u32 %v548, 2147483648
        %v576 = vxor.u32 %v551, 2147483648
        %v577 = vxor.u32 %v554, 2147483648
        %v578 = vxor.u32 %v557, 2147483648
        %v579 = vxor.u32 %v560, 2147483648
        %v580 = vxor.u32 %v563, 2147483648
        %v581 = vmul.f32 %v565, 1.442695
        %v582 = vpow.pop %v581
        %v583 = vmul.f32 %v566, 1.442695
        %v584 = vpow.pop %v583
        %v585 = vmul.f32 %v567, 1.442695
        %v586 = vpow.pop %v585
        %v587 = vmul.f32 %v568, 1.442695
        %v588 = vpow.pop %v587
        %v589 = vmul.f32 %v569, 1.442695
        %v590 = vpow.pop %v589
        %v591 = vmul.f32 %v570, 1.442695
        %v592 = vpow.pop %v591
        %v593 = vmul.f32 %v571, 1.442695
        %v594 = vpow.pop %v593
        %v595 = vmul.f32 %v572, 1.442695
        %v596 = vpow.pop %v595
        %v597 = vmul.f32 %v573, 1.442695
        %v598 = vpow.pop %v597
        %v599 = vmul.f32 %v574, 1.442695
        %v600 = vpow.pop %v599
        %v601 = vmul.f32 %v575, 1.442695
        %v602 = vpow.pop %v601
        %v603 = vmul.f32 %v576, 1.442695
        %v604 = vpow.pop %v603
        %v605 = vmul.f32 %v577, 1.442695
        %v606 = vpow.pop %v605
        %v607 = vmul.f32 %v578, 1.442695
        %v608 = vpow.pop %v607
        %v609 = vmul.f32 %v579, 1.442695
        %v610 = vpow.pop %v609
        %v611 = vmul.f32 %v580, 1.442695
        %v612 = vpow.pop %v611
        %v613 = vadd.f32 %v582, 1.0
        %v614 = vadd.f32 %v584, 1.0
        %v615 = vadd.f32 %v586, 1.0
        %v616 = vadd.f32 %v588, 1.0
        %v617 = vadd.f32 %v590, 1.0
        %v618 = vadd.f32 %v592, 1.0
        %v619 = vadd.f32 %v594, 1.0
        %v620 = vadd.f32 %v596, 1.0
        %v621 = vadd.f32 %v598, 1.0
        %v622 = vadd.f32 %v600, 1.0
        %v623 = vadd.f32 %v602, 1.0
        %v624 = vadd.f32 %v604, 1.0
        %v625 = vadd.f32 %v606, 1.0
        %v626 = vadd.f32 %v608, 1.0
        %v627 = vadd.f32 %v610, 1.0
        %v628 = vadd.f32 %v612, 1.0
        %v629 = vrcp.pop %v613
        %v630 = vmul.f32 %v613, %v629
        %v631 = vsub.f32 1.0, %v630
        %v632 = vmul.f32 %v629, %v631
        %v633 = vadd.f32 %v629, %v632
        %vm634 = vweird.f32 %v613
        %vm635 = vweird.f32 %v629
        %vm636 = vmor %vm634, %vm635
        %v637 = vsel %vm636, %v629, %v633
        %v638 = vand.u32 2147483647, %v613
        %vm639 = vcmp.eq.f32.partialorder %v638, 8.507059e+37
        %v640 = vand.u32 %v613, 2147483648
        %v641 = vor.u32 1.1754944e-38, %v640
        %v642 = vsel %vm639, %v641, %v637
        %v643 = vmul.f32 1.0, %v642
        %v644 = vrcp.pop %v614
        %v645 = vmul.f32 %v614, %v644
        %v646 = vsub.f32 1.0, %v645
        %v647 = vmul.f32 %v644, %v646
        %v648 = vadd.f32 %v644, %v647
        %vm649 = vweird.f32 %v614
        %vm650 = vweird.f32 %v644
        %vm651 = vmor %vm649, %vm650
        %v652 = vsel %vm651, %v644, %v648
        %v653 = vand.u32 2147483647, %v614
        %vm654 = vcmp.eq.f32.partialorder %v653, 8.507059e+37
        %v655 = vand.u32 %v614, 2147483648
        %v656 = vor.u32 1.1754944e-38, %v655
        %v657 = vsel %vm654, %v656, %v652
        %v658 = vmul.f32 1.0, %v657
        %v659 = vrcp.pop %v615
        %v660 = vmul.f32 %v615, %v659
        %v661 = vsub.f32 1.0, %v660
        %v662 = vmul.f32 %v659, %v661
        %v663 = vadd.f32 %v659, %v662
        %vm664 = vweird.f32 %v615
        %vm665 = vweird.f32 %v659
        %vm666 = vmor %vm664, %vm665
        %v667 = vsel %vm666, %v659, %v663
        %v668 = vand.u32 2147483647, %v615
        %vm669 = vcmp.eq.f32.partialorder %v668, 8.507059e+37
        %v670 = vand.u32 %v615, 2147483648
        %v671 = vor.u32 1.1754944e-38, %v670
        %v672 = vsel %vm669, %v671, %v667
        %v673 = vmul.f32 1.0, %v672
        %v674 = vrcp.pop %v616
        %v675 = vmul.f32 %v616, %v674
        %v676 = vsub.f32 1.0, %v675
        %v677 = vmul.f32 %v674, %v676
        %v678 = vadd.f32 %v674, %v677
        %vm679 = vweird.f32 %v616
        %vm680 = vweird.f32 %v674
        %vm681 = vmor %vm679, %vm680
        %v682 = vsel %vm681, %v674, %v678
        %v683 = vand.u32 2147483647, %v616
        %vm684 = vcmp.eq.f32.partialorder %v683, 8.507059e+37
        %v685 = vand.u32 %v616, 2147483648
        %v686 = vor.u32 1.1754944e-38, %v685
        %v687 = vsel %vm684, %v686, %v682
        %v688 = vmul.f32 1.0, %v687
        %v689 = vrcp.pop %v617
        %v690 = vmul.f32 %v617, %v689
        %v691 = vsub.f32 1.0, %v690
        %v692 = vmul.f32 %v689, %v691
        %v693 = vadd.f32 %v689, %v692
        %vm694 = vweird.f32 %v617
        %vm695 = vweird.f32 %v689
        %vm696 = vmor %vm694, %vm695
        %v697 = vsel %vm696, %v689, %v693
        %v698 = vand.u32 2147483647, %v617
        %vm699 = vcmp.eq.f32.partialorder %v698, 8.507059e+37
        %v700 = vand.u32 %v617, 2147483648
        %v701 = vor.u32 1.1754944e-38, %v700
        %v702 = vsel %vm699, %v701, %v697
        %v703 = vmul.f32 1.0, %v702
        %v704 = vrcp.pop %v618
        %v705 = vmul.f32 %v618, %v704
        %v706 = vsub.f32 1.0, %v705
        %v707 = vmul.f32 %v704, %v706
        %v708 = vadd.f32 %v704, %v707
        %vm709 = vweird.f32 %v618
        %vm710 = vweird.f32 %v704
        %vm711 = vmor %vm709, %vm710
        %v712 = vsel %vm711, %v704, %v708
        %v713 = vand.u32 2147483647, %v618
        %vm714 = vcmp.eq.f32.partialorder %v713, 8.507059e+37
        %v715 = vand.u32 %v618, 2147483648
        %v716 = vor.u32 1.1754944e-38, %v715
        %v717 = vsel %vm714, %v716, %v712
        %v718 = vmul.f32 1.0, %v717
        %v719 = vrcp.pop %v619
        %v720 = vmul.f32 %v619, %v719
        %v721 = vsub.f32 1.0, %v720
        %v722 = vmul.f32 %v719, %v721
        %v723 = vadd.f32 %v719, %v722
        %vm724 = vweird.f32 %v619
        %vm725 = vweird.f32 %v719
        %vm726 = vmor %vm724, %vm725
        %v727 = vsel %vm726, %v719, %v723
        %v728 = vand.u32 2147483647, %v619
        %vm729 = vcmp.eq.f32.partialorder %v728, 8.507059e+37
        %v730 = vand.u32 %v619, 2147483648
        %v731 = vor.u32 1.1754944e-38, %v730
        %v732 = vsel %vm729, %v731, %v727
        %v733 = vmul.f32 1.0, %v732
        %v734 = vrcp.pop %v620
        %v735 = vmul.f32 %v620, %v734
        %v736 = vsub.f32 1.0, %v735
        %v737 = vmul.f32 %v734, %v736
        %v738 = vadd.f32 %v734, %v737
        %vm739 = vweird.f32 %v620
        %vm740 = vweird.f32 %v734
        %vm741 = vmor %vm739, %vm740
        %v742 = vsel %vm741, %v734, %v738
        %v743 = vand.u32 2147483647, %v620
        %vm744 = vcmp.eq.f32.partialorder %v743, 8.507059e+37
        %v745 = vand.u32 %v620, 2147483648
        %v746 = vor.u32 1.1754944e-38, %v745
        %v747 = vsel %vm744, %v746, %v742
        %v748 = vmul.f32 1.0, %v747
        %v749 = vrcp.pop %v621
        %v750 = vmul.f32 %v621, %v749
        %v751 = vsub.f32 1.0, %v750
        %v752 = vmul.f32 %v749, %v751
        %v753 = vadd.f32 %v749, %v752
        %vm754 = vweird.f32 %v621
        %vm755 = vweird.f32 %v749
        %vm756 = vmor %vm754, %vm755
        %v757 = vsel %vm756, %v749, %v753
        %v758 = vand.u32 2147483647, %v621
        %vm759 = vcmp.eq.f32.partialorder %v758, 8.507059e+37
        %v760 = vand.u32 %v621, 2147483648
        %v761 = vor.u32 1.1754944e-38, %v760
        %v762 = vsel %vm759, %v761, %v757
        %v763 = vmul.f32 1.0, %v762
        %v764 = vrcp.pop %v622
        %v765 = vmul.f32 %v622, %v764
        %v766 = vsub.f32 1.0, %v765
        %v767 = vmul.f32 %v764, %v766
        %v768 = vadd.f32 %v764, %v767
        %vm769 = vweird.f32 %v622
        %vm770 = vweird.f32 %v764
        %vm771 = vmor %vm769, %vm770
        %v772 = vsel %vm771, %v764, %v768
        %v773 = vand.u32 2147483647, %v622
        %vm774 = vcmp.eq.f32.partialorder %v773, 8.507059e+37
        %v775 = vand.u32 %v622, 2147483648
        %v776 = vor.u32 1.1754944e-38, %v775
        %v777 = vsel %vm774, %v776, %v772
        %v778 = vmul.f32 1.0, %v777
        %v779 = vrcp.pop %v623
        %v780 = vmul.f32 %v623, %v779
        %v781 = vsub.f32 1.0, %v780
        %v782 = vmul.f32 %v779, %v781
        %v783 = vadd.f32 %v779, %v782
        %vm784 = vweird.f32 %v623
        %vm785 = vweird.f32 %v779
        %vm786 = vmor %vm784, %vm785
        %v787 = vsel %vm786, %v779, %v783
        %v788 = vand.u32 2147483647, %v623
        %vm789 = vcmp.eq.f32.partialorder %v788, 8.507059e+37
        %v790 = vand.u32 %v623, 2147483648
        %v791 = vor.u32 1.1754944e-38, %v790
        %v792 = vsel %vm789, %v791, %v787
        %v793 = vmul.f32 1.0, %v792
        %v794 = vrcp.pop %v624
        %v795 = vmul.f32 %v624, %v794
        %v796 = vsub.f32 1.0, %v795
        %v797 = vmul.f32 %v794, %v796
        %v798 = vadd.f32 %v794, %v797
        %vm799 = vweird.f32 %v624
        %vm800 = vweird.f32 %v794
        %vm801 = vmor %vm799, %vm800
        %v802 = vsel %vm801, %v794, %v798
        %v803 = vand.u32 2147483647, %v624
        %vm804 = vcmp.eq.f32.partialorder %v803, 8.507059e+37
        %v805 = vand.u32 %v624, 2147483648
        %v806 = vor.u32 1.1754944e-38, %v805
        %v807 = vsel %vm804, %v806, %v802
        %v808 = vmul.f32 1.0, %v807
        %v809 = vrcp.pop %v625
        %v810 = vmul.f32 %v625, %v809
        %v811 = vsub.f32 1.0, %v810
        %v812 = vmul.f32 %v809, %v811
        %v813 = vadd.f32 %v809, %v812
        %vm814 = vweird.f32 %v625
        %vm815 = vweird.f32 %v809
        %vm816 = vmor %vm814, %vm815
        %v817 = vsel %vm816, %v809, %v813
        %v818 = vand.u32 2147483647, %v625
        %vm819 = vcmp.eq.f32.partialorder %v818, 8.507059e+37
        %v820 = vand.u32 %v625, 2147483648
        %v821 = vor.u32 1.1754944e-38, %v820
        %v822 = vsel %vm819, %v821, %v817
        %v823 = vmul.f32 1.0, %v822
        %v824 = vrcp.pop %v626
        %v825 = vmul.f32 %v626, %v824
        %v826 = vsub.f32 1.0, %v825
        %v827 = vmul.f32 %v824, %v826
        %v828 = vadd.f32 %v824, %v827
        %vm829 = vweird.f32 %v626
        %vm830 = vweird.f32 %v824
        %vm831 = vmor %vm829, %vm830
        %v832 = vsel %vm831, %v824, %v828
        %v833 = vand.u32 2147483647, %v626
        %vm834 = vcmp.eq.f32.partialorder %v833, 8.507059e+37
        %v835 = vand.u32 %v626, 2147483648
        %v836 = vor.u32 1.1754944e-38, %v835
        %v837 = vsel %vm834, %v836, %v832
        %v838 = vmul.f32 1.0, %v837
        %v839 = vrcp.pop %v627
        %v840 = vmul.f32 %v627, %v839
        %v841 = vsub.f32 1.0, %v840
        %v842 = vmul.f32 %v839, %v841
        %v843 = vadd.f32 %v839, %v842
        %vm844 = vweird.f32 %v627
        %vm845 = vweird.f32 %v839
        %vm846 = vmor %vm844, %vm845
        %v847 = vsel %vm846, %v839, %v843
        %v848 = vand.u32 2147483647, %v627
        %vm849 = vcmp.eq.f32.partialorder %v848, 8.507059e+37
        %v850 = vand.u32 %v627, 2147483648
        %v851 = vor.u32 1.1754944e-38, %v850
        %v852 = vsel %vm849, %v851, %v847
        %v853 = vmul.f32 1.0, %v852
        %v854 = vrcp.pop %v628
        %v855 = vmul.f32 %v628, %v854
        %v856 = vsub.f32 1.0, %v855
        %v857 = vmul.f32 %v854, %v856
        %v858 = vadd.f32 %v854, %v857
        %vm859 = vweird.f32 %v628
        %vm860 = vweird.f32 %v854
        %vm861 = vmor %vm859, %vm860
        %v862 = vsel %vm861, %v854, %v858
        %v863 = vand.u32 2147483647, %v628
        %vm864 = vcmp.eq.f32.partialorder %v863, 8.507059e+37
        %v865 = vand.u32 %v628, 2147483648
        %v866 = vor.u32 1.1754944e-38, %v865
        %v867 = vsel %vm864, %v866, %v862
        %v868 = vmul.f32 1.0, %v867
        %v869 = vld [vmem:[%s5] sm:$0x1]
        %s870 = sld [smem:[#allocation2]]
        %v871 = vstv %s870
        %872 = vmatpush.msra.mxu0 %v330
        %873 = vmatpush.msra.mxu0 %v328
        %874 = vmatpush.msra.mxu0 %v326
        %875 = vmatpush.msra.mxu0 %v324
        %876 = vmatpush.msra.mxu0 %v322
        %877 = vmatpush.msra.mxu0 %v320
        %878 = vmatpush.msra.mxu0 %v318
        %879 = vmatpush.msra.mxu0 %v316
        %880 = vmatpush.msra.mxu0 %v314
        %881 = vmatpush.msra.mxu0 %v312
        %882 = vmatpush.msra.mxu0 %v310
        %883 = vmatpush.msra.mxu0 %v308
        %884 = vmatpush.msra.mxu0 %v306
        %885 = vmatpush.msra.mxu0 %v304
        %886 = vmatpush.msra.mxu0 %v302
        %887 = vmatpush.msra.mxu0 %v300
        %888 = vmatmul.f32.gmra.mxu0 %v869
        %v889 = vpop.f32.mrf.mxu0
        %v890 = vadd.f32 %v871, %v889
        %891 = vdwg.mxu0
        %892 = vmatpush.msra.mxu0 %v331
        %893 = vmatpush.msra.mxu0 %v329
        %894 = vmatpush.msra.mxu0 %v327
        %895 = vmatpush.msra.mxu0 %v325
        %896 = vmatpush.msra.mxu0 %v323
        %897 = vmatpush.msra.mxu0 %v321
        %898 = vmatpush.msra.mxu0 %v319
        %899 = vmatpush.msra.mxu0 %v317
        %900 = vmatpush.msra.mxu0 %v315
        %901 = vmatpush.msra.mxu0 %v313
        %902 = vmatpush.msra.mxu0 %v311
        %903 = vmatpush.msra.mxu0 %v309
        %904 = vmatpush.msra.mxu0 %v307
        %905 = vmatpush.msra.mxu0 %v305
        %906 = vmatpush.msra.mxu0 %v303
        %907 = vmatpush.msra.mxu0 %v301
        %908 = vmatmul.f32.gmra.mxu0 %v869
        %v909 = vpop.f32.mrf.mxu0
        %v910 = vadd.f32 %v871, %v909
        %911 = vdwg.mxu0
        %v912 = vxor.u32 %v890, 2147483648
        %v913 = vxor.u32 %v910, 2147483648
        %v914 = vmul.f32 %v912, 1.442695
        %v915 = vpow.pop %v914
        %v916 = vmul.f32 %v913, 1.442695
        %v917 = vpow.pop %v916
        %v918 = vadd.f32 %v915, 1.0
        %v919 = vadd.f32 %v917, 1.0
        %v920 = vrcp.pop %v918
        %v921 = vmul.f32 %v918, %v920
        %v922 = vsub.f32 1.0, %v921
        %v923 = vmul.f32 %v920, %v922
        %v924 = vadd.f32 %v920, %v923
        %vm925 = vweird.f32 %v918
        %vm926 = vweird.f32 %v920
        %vm927 = vmor %vm925, %vm926
        %v928 = vsel %vm927, %v920, %v924
        %v929 = vand.u32 2147483647, %v918
        %vm930 = vcmp.eq.f32.partialorder %v929, 8.507059e+37
        %v931 = vand.u32 %v918, 2147483648
        %v932 = vor.u32 1.1754944e-38, %v931
        %v933 = vsel %vm930, %v932, %v928
        %v934 = vmul.f32 1.0, %v933
        %v935 = vrcp.pop %v919
        %v936 = vmul.f32 %v919, %v935
        %v937 = vsub.f32 1.0, %v936
        %v938 = vmul.f32 %v935, %v937
        %v939 = vadd.f32 %v935, %v938
        %vm940 = vweird.f32 %v919
        %vm941 = vweird.f32 %v935
        %vm942 = vmor %vm940, %vm941
        %v943 = vsel %vm942, %v935, %v939
        %v944 = vand.u32 2147483647, %v919
        %vm945 = vcmp.eq.f32.partialorder %v944, 8.507059e+37
        %v946 = vand.u32 %v919, 2147483648
        %v947 = vor.u32 1.1754944e-38, %v946
        %v948 = vsel %vm945, %v947, %v943
        %v949 = vmul.f32 1.0, %v948
        %951 = vset.pattern.permute.xlu0 0
        %952 = vperm.xlu0 %951, %v643
        %v953 = vpop.permute.xlu0 %952
        %956 = vset.pattern.permute.xlu0 0
        %957 = vperm.xlu0 %956, %v658
        %v958 = vpop.permute.xlu0 %957
        %961 = vset.pattern.permute.xlu0 0
        %962 = vperm.xlu0 %961, %v673
        %v963 = vpop.permute.xlu0 %962
        %966 = vset.pattern.permute.xlu0 0
        %967 = vperm.xlu0 %966, %v688
        %v968 = vpop.permute.xlu0 %967
        %971 = vset.pattern.permute.xlu0 0
        %972 = vperm.xlu0 %971, %v703
        %v973 = vpop.permute.xlu0 %972
        %976 = vset.pattern.permute.xlu0 0
        %977 = vperm.xlu0 %976, %v718
        %v978 = vpop.permute.xlu0 %977
        %981 = vset.pattern.permute.xlu0 0
        %982 = vperm.xlu0 %981, %v733
        %v983 = vpop.permute.xlu0 %982
        %986 = vset.pattern.permute.xlu0 0
        %987 = vperm.xlu0 %986, %v748
        %v988 = vpop.permute.xlu0 %987
        %991 = vset.pattern.permute.xlu0 0
        %992 = vperm.xlu0 %991, %v763
        %v993 = vpop.permute.xlu0 %992
        %996 = vset.pattern.permute.xlu0 0
        %997 = vperm.xlu0 %996, %v778
        %v998 = vpop.permute.xlu0 %997
        %1001 = vset.pattern.permute.xlu0 0
        %1002 = vperm.xlu0 %1001, %v793
        %v1003 = vpop.permute.xlu0 %1002
        %1006 = vset.pattern.permute.xlu0 0
        %1007 = vperm.xlu0 %1006, %v808
        %v1008 = vpop.permute.xlu0 %1007
        %1011 = vset.pattern.permute.xlu0 0
        %1012 = vperm.xlu0 %1011, %v823
        %v1013 = vpop.permute.xlu0 %1012
        %1016 = vset.pattern.permute.xlu0 0
        %1017 = vperm.xlu0 %1016, %v838
        %v1018 = vpop.permute.xlu0 %1017
        %1021 = vset.pattern.permute.xlu0 0
        %1022 = vperm.xlu0 %1021, %v853
        %v1023 = vpop.permute.xlu0 %1022
        %1026 = vset.pattern.permute.xlu0 0
        %1027 = vperm.xlu0 %1026, %v868
        %v1028 = vpop.permute.xlu0 %1027
        %v1030 = vperm.slane %v934, 0
        %v1031 = vperm.slane %v949, 0
        %v1032 = vadd.f32 %v953, %v1030
        %v1033 = vadd.f32 %v953, %v1031
        %v1034 = vadd.f32 %v958, %v1030
        %v1035 = vadd.f32 %v958, %v1031
        %v1036 = vadd.f32 %v963, %v1030
        %v1037 = vadd.f32 %v963, %v1031
        %v1038 = vadd.f32 %v968, %v1030
        %v1039 = vadd.f32 %v968, %v1031
        %v1040 = vadd.f32 %v973, %v1030
        %v1041 = vadd.f32 %v973, %v1031
        %v1042 = vadd.f32 %v978, %v1030
        %v1043 = vadd.f32 %v978, %v1031
        %v1044 = vadd.f32 %v983, %v1030
        %v1045 = vadd.f32 %v983, %v1031
        %v1046 = vadd.f32 %v988, %v1030
        %v1047 = vadd.f32 %v988, %v1031
        %v1048 = vadd.f32 %v993, %v1030
        %v1049 = vadd.f32 %v993, %v1031
        %v1050 = vadd.f32 %v998, %v1030
        %v1051 = vadd.f32 %v998, %v1031
        %v1052 = vadd.f32 %v1003, %v1030
        %v1053 = vadd.f32 %v1003, %v1031
        %v1054 = vadd.f32 %v1008, %v1030
        %v1055 = vadd.f32 %v1008, %v1031
        %v1056 = vadd.f32 %v1013, %v1030
        %v1057 = vadd.f32 %v1013, %v1031
        %v1058 = vadd.f32 %v1018, %v1030
        %v1059 = vadd.f32 %v1018, %v1031
        %v1060 = vadd.f32 %v1023, %v1030
        %v1061 = vadd.f32 %v1023, %v1031
        %v1062 = vadd.f32 %v1028, %v1030
        %v1063 = vadd.f32 %v1028, %v1031
        %v1064 = vmul.f32 %v300, %v1032
        %v1065 = vmul.f32 %v301, %v1033
        %v1066 = vmul.f32 %v302, %v1034
        %v1067 = vmul.f32 %v303, %v1035
        %v1068 = vmul.f32 %v304, %v1036
        %v1069 = vmul.f32 %v305, %v1037
        %v1070 = vmul.f32 %v306, %v1038
        %v1071 = vmul.f32 %v307, %v1039
        %v1072 = vmul.f32 %v308, %v1040
        %v1073 = vmul.f32 %v309, %v1041
        %v1074 = vmul.f32 %v310, %v1042
        %v1075 = vmul.f32 %v311, %v1043
        %v1076 = vmul.f32 %v312, %v1044
        %v1077 = vmul.f32 %v313, %v1045
        %v1078 = vmul.f32 %v314, %v1046
        %v1079 = vmul.f32 %v315, %v1047
        %v1080 = vmul.f32 %v316, %v1048
        %v1081 = vmul.f32 %v317, %v1049
        %v1082 = vmul.f32 %v318, %v1050
        %v1083 = vmul.f32 %v319, %v1051
        %v1084 = vmul.f32 %v320, %v1052
        %v1085 = vmul.f32 %v321, %v1053
        %v1086 = vmul.f32 %v322, %v1054
        %v1087 = vmul.f32 %v323, %v1055
        %v1088 = vmul.f32 %v324, %v1056
        %v1089 = vmul.f32 %v325, %v1057
        %v1090 = vmul.f32 %v326, %v1058
        %v1091 = vmul.f32 %v327, %v1059
        %v1092 = vmul.f32 %v328, %v1060
        %v1093 = vmul.f32 %v329, %v1061
        %v1094 = vmul.f32 %v330, %v1062
        %v1095 = vmul.f32 %v331, %v1063
        %1096 = vst [vmem:[%s299] sm:$0xff] %v1064
        %1097 = vst [vmem:[%s299 + $0x8] sm:$0xff] %v1065
        %1098 = vst [vmem:[%s299 + $0x10] sm:$0xff] %v1066
        %1099 = vst [vmem:[%s299 + $0x18] sm:$0xff] %v1067
        %1100 = vst [vmem:[%s299 + $0x20] sm:$0xff] %v1068
        %1101 = vst [vmem:[%s299 + $0x28] sm:$0xff] %v1069
        %1102 = vst [vmem:[%s299 + $0x30] sm:$0xff] %v1070
        %1103 = vst [vmem:[%s299 + $0x38] sm:$0xff] %v1071
        %1104 = vst [vmem:[%s299 + $0x40] sm:$0xff] %v1072
        %1105 = vst [vmem:[%s299 + $0x48] sm:$0xff] %v1073
        %1106 = vst [vmem:[%s299 + $0x50] sm:$0xff] %v1074
        %1107 = vst [vmem:[%s299 + $0x58] sm:$0xff] %v1075
        %1108 = vst [vmem:[%s299 + $0x60] sm:$0xff] %v1076
        %1109 = vst [vmem:[%s299 + $0x68] sm:$0xff] %v1077
        %1110 = vst [vmem:[%s299 + $0x70] sm:$0xff] %v1078
        %1111 = vst [vmem:[%s299 + $0x78] sm:$0xff] %v1079
        %1112 = vst [vmem:[%s299 + $0x80] sm:$0xff] %v1080
        %1113 = vst [vmem:[%s299 + $0x88] sm:$0xff] %v1081
        %1114 = vst [vmem:[%s299 + $0x90] sm:$0xff] %v1082
        %1115 = vst [vmem:[%s299 + $0x98] sm:$0xff] %v1083
        %1116 = vst [vmem:[%s299 + $0xa0] sm:$0xff] %v1084
        %1117 = vst [vmem:[%s299 + $0xa8] sm:$0xff] %v1085
        %1118 = vst [vmem:[%s299 + $0xb0] sm:$0xff] %v1086
        %1119 = vst [vmem:[%s299 + $0xb8] sm:$0xff] %v1087
        %1120 = vst [vmem:[%s299 + $0xc0] sm:$0xff] %v1088
        %1121 = vst [vmem:[%s299 + $0xc8] sm:$0xff] %v1089
        %1122 = vst [vmem:[%s299 + $0xd0] sm:$0xff] %v1090
        %1123 = vst [vmem:[%s299 + $0xd8] sm:$0xff] %v1091
        %1124 = vst [vmem:[%s299 + $0xe0] sm:$0xff] %v1092
        %1125 = vst [vmem:[%s299 + $0xe8] sm:$0xff] %v1093
        %1126 = vst [vmem:[%s299 + $0xf0] sm:$0xff] %v1094
        %1127 = vst [vmem:[%s299 + $0xf8] sm:$0xff] %v1095
        %s1128 = sand.u32 %s185, 1
        %s1129 = scalar_lea.sflag [#allocation5], %s1128
        %s1130 = sand.u32 %s185, 1
        %s1131 = smul.addr %s1130, 256
        %s1132 = scalar_lea.vmem [#allocation6], %s1131
        // Predicated region
        $region53: #{tpu_custom_call.1} parent=47 // pred_check
          %p1133 = pneg %p195
        $region54: #{tpu_custom_call.1} parent=47 // pred_check_branch
          %1135 = sbr.rel (%p1133) target = $region56
        $region55: #{tpu_custom_call.1} parent=47 // pred_region
          %1137 = vsyncadd %s1129, 0
          %s1138 = smul.addr %s25, 32
          %s1139 = smul.addr %s1138, 8
          %s1140 = scalar_lea.hbm %s7, %s1139
          %s1141 = sshll.u32 %s1132, 4
          %s1142 = int_to_ptr.vmem [resolvable:$true] %s1141
          %s1143 = sshll.u32 %s1140, 4
          %s1144 = int_to_ptr.hbm [resolvable:$true] %s1143
          %1149 = dma.vmem_to_hbm [thread:$0]  %s1142, 4096, %s1144, %s1129, 256, 256, 16
        $region56: #{tpu_custom_call.1} parent=47 // pred_fallthru
          _
      $region48: #{tpu_custom_call.1} parent=5 // pred_fallthru
        _
      %p1150 = scmp.le.s32.totalorder 2, %s20
      // Predicated region
      $region57: #{tpu_custom_call.1} parent=5 // pred_check
        %p1151 = pneg %p1150
      $region58: #{tpu_custom_call.1} parent=5 // pred_check_branch
        %1153 = sbr.rel (%p1151) target = $region60
      $region59: #{tpu_custom_call.1} parent=5 // pred_region
        %s1154 = ssub.s32 %s20, 2
        // Predicated region
        $region61: #{tpu_custom_call.1} parent=59 // pred_check
          %p1155 = pneg %p201
        $region62: #{tpu_custom_call.1} parent=59 // pred_check_branch
          %1157 = sbr.rel (%p1155) target = $region64
        $region63: #{tpu_custom_call.1} parent=59 // pred_region
          %s1158 = sand.u32 %s186, 1
          %s1159 = scalar_lea.sflag [#allocation5], %s1158
          %s1160 = sand.u32 %s186, 1
          %s1161 = smul.addr %s1160, 256
          %s1162 = scalar_lea.vmem [#allocation6], %s1161
          %1164 = dma.done %s1159, 4096
        $region64: #{tpu_custom_call.1} parent=59 // pred_fallthru
          _
      $region60: #{tpu_custom_call.1} parent=5 // pred_fallthru
        _
    $region6: #{tpu_custom_call.1} parent=1 // loop_footer
      %s24 = sadd.s32 1, %s20
    $region7: #{tpu_custom_call.1} parent=1 // loop_footer_branch
      %19 = sbr.rel target = $region3
    $region8: #{tpu_custom_call.1} parent=1 // loop_exit
      _
    %1165 = vsyncpa [#allocation4], 1
    %s1166 = scalar_lea.sflag [#allocation4], 1
    %1167 = vsyncpa %s1166, 1
    %1168 = vsyncpa [#allocation5], 1
    %s1169 = scalar_lea.sflag [#allocation5], 1
    %1170 = vsyncpa %s1169, 1

</llo_original>
